<compile_context>
chip_gen: v7x
topology: tpu7x:2x2x1
jax: 0.10.0
libtpu: 0.0.40
codegen_flags: <defaults>
</compile_context>

<pallas_src>
import functools

import jax
import jax.numpy as jnp
from jax.experimental import pallas as pl
from jax.experimental.pallas import tpu as pltpu


def _round_up(x: int, m: int) -> int:
    return ((x + m - 1) // m) * m


def _round_down(x: int, m: int) -> int:
    return (x // m) * m


# Conservative budget for the double-buffered input slabs:
# 2 inputs x 2 pipeline buffers x F x b_tile x itemsize  <=  _VMEM_INPUT_BUDGET.
# 12 MiB leaves headroom under v5e's 16 MiB default scoped VMEM.
_VMEM_INPUT_BUDGET = 12 * 1024 * 1024


def _mf_dot_kernel(u_ref, i_ref, out_ref):
    """One grid step == one batch tile.

    u_ref / i_ref : (F, B_TILE) gathered embedding rows, native dtype, batch on lanes
    out_ref       : (1, B_TILE) lane-dense per-step output block (f32)
    """
    # Upcast in-kernel (works on all generations; halves DMA when tables are bf16).
    prod = u_ref[...].astype(jnp.float32) * i_ref[...].astype(jnp.float32)  # VPU
    out_ref[...] = jnp.sum(prod, axis=0, keepdims=True)                     # XLU sublane reduce


@functools.partial(jax.jit, static_argnames=("b_tile",))
def base_mf_forward(user, item, user_factor_t, item_factor_t, b_tile: int = 8192):
    """MF forward.

    user, item      : (B,) int32 indices
    user_factor_t   : (F, U) pre-transposed user embedding table
    item_factor_t   : (F, I) pre-transposed item embedding table
    Returns (B,) float32 predictions (0-d when B == 1, matching torch .squeeze()).
    """
    B = user.shape[0]
    F = user_factor_t.shape[0]
    itemsize = jnp.dtype(user_factor_t.dtype).itemsize

    # Tile sizing: lane-dense multiple of 128, no larger than the padded batch,
    # capped so double-buffered input slabs fit the VMEM budget.
    max_tile_vmem = _VMEM_INPUT_BUDGET // (2 * 2 * F * itemsize)
    b_tile = min(b_tile, max_tile_vmem, _round_up(B, 128))
    b_tile = max(128, _round_down(b_tile, 128))
    B_pad = _round_up(B, b_tile)

    # Pad indices with 0 (always a valid row); padded lanes are sliced off below.
    user_p = jnp.pad(user, (0, B_pad - B))
    item_p = jnp.pad(item, (0, B_pad - B))

    # Gather along axis=1 of the pre-transposed tables: slabs arrive already as
    # (F, B_pad) with batch on lanes — no per-call transpose, no f32 pre-cast.
    u_rows = user_factor_t[:, user_p]   # (F, B_pad), native dtype
    i_rows = item_factor_t[:, item_p]   # (F, B_pad), native dtype

    grid = (B_pad // b_tile,)
    out = pl.pallas_call(
        _mf_dot_kernel,
        out_shape=jax.ShapeDtypeStruct((1, B_pad), jnp.float32),
        grid_spec=pltpu.PrefetchScalarGridSpec(
            num_scalar_prefetch=0,
            grid=grid,
            in_specs=[
                pl.BlockSpec((F, b_tile), lambda i: (0, i)),
                pl.BlockSpec((F, b_tile), lambda i: (0, i)),
            ],
            out_specs=pl.BlockSpec((1, b_tile), lambda i: (0, i)),
        ),
        compiler_params=pltpu.CompilerParams(
            dimension_semantics=("parallel",),  # each step owns its output block
        ),
    )(u_rows, i_rows)

    preds = out[0, :B]
    # torch: (B, 1) -> .squeeze() -> (B,), or 0-d when B == 1.
    return jnp.squeeze(preds) if B == 1 else preds


if __name__ == "__main__":
    # Model dims (synthetic, deterministic init — no checkpoint load).
    USERS, ITEMS, FACTORS = 16, 32, 32
    BATCH = 8

    key = jax.random.PRNGKey(0)
    k_uf, k_if, k_u, k_i = jax.random.split(key, 4)

    # nn.Embedding default init: N(0, 1).  Stored row-major (U, F) / (I, F).
    user_factor = jax.random.normal(k_uf, (USERS, FACTORS), dtype=jnp.float32)
    item_factor = jax.random.normal(k_if, (ITEMS, FACTORS), dtype=jnp.float32)

    # Pre-transpose ONCE (per weight update, not per batch) as recommended.
    user_factor_t = jnp.asarray(user_factor.T)   # (F, U)
    item_factor_t = jnp.asarray(item_factor.T)   # (F, I)

    user = jax.random.randint(k_u, (BATCH,), 0, USERS, dtype=jnp.int32)
    item = jax.random.randint(k_i, (BATCH,), 0, ITEMS, dtype=jnp.int32)

    preds = base_mf_forward(user, item, user_factor_t, item_factor_t)
    preds = jax.block_until_ready(preds)

    # Pure-JAX reference check (same math as the PyTorch forward).
    ref = jnp.sum(user_factor[user] * item_factor[item], axis=1)
    assert preds.shape == (BATCH,)
    assert jnp.allclose(preds, ref, rtol=1e-5, atol=1e-5)

    print("KERNEL_OK")
</pallas_src>

<mosaic_0001>
module attributes {stable_mosaic.version = 11 : i64} {
  func.func @_mf_dot_kernel(%arg0: i32, %arg1: memref<32x128xf32, #tpu.memory_space<vmem>>, %arg2: memref<32x128xf32, #tpu.memory_space<vmem>>, %arg3: memref<1x128xf32, #tpu.memory_space<vmem>>) attributes {dimension_semantics = [#tpu.dimension_semantics<parallel>], iteration_bounds = array<i64: 1>, scalar_prefetch = 0 : i64, scratch_operands = 0 : i64, tpu.core_type = #tpu.core_type<tc>, window_params = [{transform_indices = @transform_0, window_bounds = array<i64: 32, 128>}, {transform_indices = @transform_1, window_bounds = array<i64: 32, 128>}, {transform_indices = @transform_2, window_bounds = array<i64: 1, 128>}]} {
    %c0 = arith.constant 0 : index
    %c0_0 = arith.constant 0 : index
    %0 = vector.load %arg1[%c0, %c0_0] : memref<32x128xf32, #tpu.memory_space<vmem>>, vector<32x128xf32>
    %c0_1 = arith.constant 0 : index
    %c0_2 = arith.constant 0 : index
    %1 = vector.load %arg2[%c0_1, %c0_2] : memref<32x128xf32, #tpu.memory_space<vmem>>, vector<32x128xf32>
    %2 = arith.mulf %0, %1 : vector<32x128xf32>
    %cst = arith.constant dense<0.000000e+00> : vector<128xf32>
    %3 = vector.multi_reduction <add>, %2, %cst [0] : vector<32x128xf32> to vector<128xf32>
    %4 = vector.shape_cast %3 : vector<128xf32> to vector<1x128xf32>
    %c0_3 = arith.constant 0 : index
    %c0_4 = arith.constant 0 : index
    %5 = vector.load %arg3[%c0_3, %c0_4] : memref<1x128xf32, #tpu.memory_space<vmem>>, vector<1x128xf32>
    tpu.vector_store %arg3[%c0_3, %c0_4], %4 {strides = array<i32>} : memref<1x128xf32, #tpu.memory_space<vmem>>, vector<1x128xf32>,
    return
  }
  func.func @transform_0(%arg0: i32) -> (i32, i32) {
    %c0_i32 = arith.constant 0 : i32
    %c0_i32_0 = arith.constant 0 : i32
    return %c0_i32, %arg0 : i32, i32
  }
  func.func @transform_1(%arg0: i32) -> (i32, i32) {
    %c0_i32 = arith.constant 0 : i32
    %c0_i32_0 = arith.constant 0 : i32
    return %c0_i32, %arg0 : i32, i32
  }
  func.func @transform_2(%arg0: i32) -> (i32, i32) {
    %c0_i32 = arith.constant 0 : i32
    %c0_i32_0 = arith.constant 0 : i32
    return %c0_i32, %arg0 : i32, i32
  }
}

</mosaic_0001>

<llo_original>
// kernel: base_mf_forward.1
$region0: #{base_mf_forward.1}
  #allocation0 [shape = 'u32[]', space=smem, size = 0x4, offset = 0x4, fixed_abs, tag = 'smem constant byte address 0x4 - core index']
  #allocation1 [shape = 'u32[144,128]{1,0:T(1,128)}', space=vmem, size = 0x12000, scoped, tag = 'internal scratch']
  %s0 = inlined_call_operand.vmem [shape: f32[32,128], index: 0, kind: input, shape index: {}]
  %s1 = inlined_call_operand.vmem [shape: f32[32,128], index: 1, kind: input, shape index: {}]
  %s2 = inlined_call_operand.vmem [shape: f32[1,128], index: 2, kind: output, shape index: {}]
  %s3 = sld [smem:[#allocation0]]
  $region18: #{base_mf_forward.1} parent=0
    _
  %s5 = ssub.s32 1, %s3
  %s6 = scalar_select 0, %s5, %s3
  // Predicated region
  $region2: #{base_mf_forward.1} parent=0 // pred_check
    _
  $region3: #{base_mf_forward.1} parent=0 // pred_check_branch
    %8 = sbr.rel (0) target = $region5
  $region4: #{base_mf_forward.1} parent=0 // pred_region
    _
  $region5: #{base_mf_forward.1} parent=0 // pred_fallthru
    _
  // Predicated region
  $region6: #{base_mf_forward.1} parent=0 // pred_check
    _
  $region7: #{base_mf_forward.1} parent=0 // pred_check_branch
    %10 = sbr.rel (0) target = $region9
  $region8: #{base_mf_forward.1} parent=0 // pred_region
    _
  $region9: #{base_mf_forward.1} parent=0 // pred_fallthru
    _
  %v11 = vld [vmem:[%s0] sm:$0xff]
  %v12 = vld [vmem:[%s0 + $0x8] sm:$0xff]
  %v13 = vld [vmem:[%s0 + $0x10] sm:$0xff]
  %v14 = vld [vmem:[%s0 + $0x18] sm:$0xff]
  %v15 = vld [vmem:[%s1] sm:$0xff]
  %v16 = vld [vmem:[%s1 + $0x8] sm:$0xff]
  %v17 = vld [vmem:[%s1 + $0x10] sm:$0xff]
  %v18 = vld [vmem:[%s1 + $0x18] sm:$0xff]
  %v19 = vmul.f32 %v11, %v15
  %v20 = vmul.f32 %v12, %v16
  %v21 = vmul.f32 %v13, %v17
  %v22 = vmul.f32 %v14, %v18
  %v23 = vadd.f32 %v19, %v20
  %v24 = vadd.f32 %v23, %v21
  %v25 = vadd.f32 %v24, %v22
  %v26 = vrot.slane %v25, 4
  %v27 = vadd.f32 %v25, %v26
  %v28 = vrot.slane %v27, 2
  %v29 = vadd.f32 %v27, %v28
  %v30 = vrot.slane %v29, 1
  %v31 = vadd.f32 %v29, %v30
  %32 = vst [vmem:[%s2] sm:$0x1] %v31
  // Predicated region
  $region10: #{base_mf_forward.1} parent=0 // pred_check
    _
  $region11: #{base_mf_forward.1} parent=0 // pred_check_branch
    %34 = sbr.rel (0) target = $region13
  $region12: #{base_mf_forward.1} parent=0 // pred_region
    _
  $region13: #{base_mf_forward.1} parent=0 // pred_fallthru
    _
  // Predicated region
  $region14: #{base_mf_forward.1} parent=0 // pred_check
    _
  $region15: #{base_mf_forward.1} parent=0 // pred_check_branch
    %36 = sbr.rel (0) target = $region17
  $region16: #{base_mf_forward.1} parent=0 // pred_region
    _
  $region17: #{base_mf_forward.1} parent=0 // pred_fallthru
    _

</llo_original>
